<compile_context>
chip_gen: v6e
topology: v6e:2x2x1
jax: 0.10.0
libtpu: 0.0.40
codegen_flags: <defaults>
</compile_context>

<pallas_src>
import functools
import math

import jax
import jax.numpy as jnp
from jax import lax
from jax.experimental import pallas as pl
from jax.experimental.pallas import tpu as pltpu


def _label_smoothing_kernel(x_ref, tgt_ref, out_ref, acc_ref, *,
                            size, padding_idx, smoothing, tn,
                            blocks_per_core, tgt_resident, two_axis):
    if two_axis:
        i = pl.program_id(1)                    # reduction axis (row blocks)
        blk = pl.program_id(0) * blocks_per_core + i
        last = pl.num_programs(1) - 1
    else:
        i = pl.program_id(0)
        blk = i
        last = pl.num_programs(0) - 1

    @pl.when(i == 0)
    def _():
        acc_ref[...] = jnp.zeros_like(acc_ref)

    x = x_ref[...].astype(jnp.float32)          # (tn, V) log-probs

    if tgt_resident:
        row0 = pl.multiple_of(blk * tn, 8)
        tgt = tgt_ref[pl.ds(row0, tn), :]       # (tn, 1) int32, VMEM-resident
    else:
        tgt = tgt_ref[...]                      # (tn, 1) int32, per-block DMA

    confidence = jnp.float32(1.0 - smoothing)
    smooth_val = jnp.float32(smoothing / (size - 2))

    # Unweighted row sum on the (otherwise idle) MXU: frees VPU slots.
    ones = jnp.ones((x.shape[1], 1), jnp.float32)
    rowsum = jnp.dot(x, ones, preferred_element_type=jnp.float32)   # (tn, 1)

    # Padding column: static lane slice (padding_idx is a Python int).
    pad_col = x[:, padding_idx:padding_idx + 1]                      # (tn, 1)

    # x[row, target[row]]: one compare + one select + a lane (XLU) reduce.
    cols = lax.broadcasted_iota(jnp.int32, (1, x.shape[1]), 1)       # (1, V)
    x_tgt = jnp.sum(jnp.where(cols == tgt, x, jnp.float32(0.0)),
                    axis=-1, keepdims=True)                          # (tn, 1)

    # sum_j t_j * x_j per row via the algebraic split of the smoothed weights.
    wx = smooth_val * (rowsum - pad_col) + (confidence - smooth_val) * x_tgt

    # Compile-time constant: sum_j t_j * log(t_j) for a non-pad row.
    c_ent = 0.0
    if (1.0 - smoothing) > 0.0:
        c_ent += (1.0 - smoothing) * math.log(1.0 - smoothing)
    if smoothing > 0.0:
        sv = smoothing / (size - 2)
        c_ent += (size - 2) * sv * math.log(sv)

    # where-select (not multiply-by-mask) so garbage/NaN in out-of-bounds tail
    # rows of x cannot propagate; padded targets carry padding_idx.
    row_loss = jnp.where(tgt != padding_idx,
                         jnp.float32(c_ent) - wx,
                         jnp.float32(0.0))                           # (tn, 1)
    acc_ref[...] += row_loss

    @pl.when(i == last)
    def _():
        # Single deferred cross-sublane reduce; lane-dense (1,8,128) store.
        total = jnp.sum(acc_ref[...])
        out_ref[...] = jnp.broadcast_to(total, out_ref.shape).astype(out_ref.dtype)


def _pick_tn(n, v, itemsize, target_tile_bytes=8 * 1024 * 1024, max_rows=4096):
    """Largest row tile (sublane-aligned) keeping one x tile near target size."""
    align = 8 if itemsize >= 4 else 16          # bf16 packs 16 rows / vreg
    rows = (target_tile_bytes // (itemsize * max(v, 1))) // align * align
    rows = max(align, min(max_rows, rows))
    rows_cap = max(align, ((n + align - 1) // align) * align)
    return int(min(rows, rows_cap))


def label_smoothing_loss(x, target, *, size, padding_idx, smoothing,
                         tn=None, core_splits=1):
    """x: (N, size) float log-probs, target: (N,) int.  Returns scalar loss.

    core_splits: keep 1 on single-TensorCore chips (v5e/v6e); set 2 on v7x so
    the leading CORE_PARALLEL grid axis shards row blocks across both TCs.
    """
    n, v = x.shape
    assert v == size
    assert size > 2, "label smoothing needs size > 2 (smoothing/(size-2))"
    # TODO(synk): out-of-range targets (>= size or < 0) silently degrade to
    # pure-smoothing rows; add a debug-build assert if inputs are untrusted.

    itemsize = jnp.dtype(x.dtype).itemsize
    if tn is None:
        tn = _pick_tn(n, v, itemsize)

    n_blocks = pl.cdiv(n, tn)                   # real row blocks of x
    cores = max(1, int(core_splits))
    two_axis = cores > 1
    blocks_per_core = pl.cdiv(n_blocks, cores)
    total_blocks = cores * blocks_per_core
    total_rows = total_blocks * tn

    # x is NEVER padded (avoids a full read+write (N,V) HBM copy). Only the
    # tiny target vector is padded; padded rows carry padding_idx -> zero loss.
    target = target.astype(jnp.int32)
    if total_rows != n:
        target = jnp.pad(target, (0, total_rows - n),
                         constant_values=padding_idx)
    tgt2d = target.reshape(total_rows, 1)

    # Keep the target table VMEM-resident (one DMA) unless its padded VMEM
    # footprint (~512 B/row after lane padding) would get large.
    tgt_resident = total_rows * 512 <= 4 * 1024 * 1024

    if two_axis:
        # Clamp the x block index: slots past the last real block re-read the
        # last in-bounds block; their (padded) targets mask those rows to zero.
        x_spec = pl.BlockSpec(
            (tn, v),
            lambda c, i: (jnp.minimum(c * blocks_per_core + i, n_blocks - 1), 0))
        if tgt_resident:
            t_spec = pl.BlockSpec((total_rows, 1), lambda c, i: (0, 0))
        else:
            t_spec = pl.BlockSpec((tn, 1),
                                  lambda c, i: (c * blocks_per_core + i, 0))
        o_spec = pl.BlockSpec((1, 8, 128), lambda c, i: (c, 0, 0))
        grid = (cores, blocks_per_core)
        semantics = (pltpu.CORE_PARALLEL, pltpu.ARBITRARY)
    else:
        x_spec = pl.BlockSpec((tn, v), lambda i: (i, 0))
        if tgt_resident:
            t_spec = pl.BlockSpec((total_rows, 1), lambda i: (0, 0))
        else:
            t_spec = pl.BlockSpec((tn, 1), lambda i: (i, 0))
        o_spec = pl.BlockSpec((1, 8, 128), lambda i: (0, 0, 0))
        grid = (n_blocks,)
        semantics = (pltpu.ARBITRARY,)

    kernel = functools.partial(
        _label_smoothing_kernel,
        size=size, padding_idx=padding_idx, smoothing=smoothing,
        tn=tn, blocks_per_core=blocks_per_core,
        tgt_resident=tgt_resident, two_axis=two_axis)

    out = pl.pallas_call(
        kernel,
        out_shape=jax.ShapeDtypeStruct((cores, 8, 128), jnp.float32),
        grid_spec=pltpu.PrefetchScalarGridSpec(
            num_scalar_prefetch=0,
            grid=grid,
            in_specs=[x_spec, t_spec],
            out_specs=o_spec,
            scratch_shapes=[pltpu.VMEM((tn, 1), jnp.float32)],
        ),
        compiler_params=pltpu.CompilerParams(
            dimension_semantics=semantics,
            vmem_limit_bytes=48 * 1024 * 1024),
        cost_estimate=pl.CostEstimate(
            flops=int(4 * n * v),
            transcendentals=0,
            bytes_accessed=int(itemsize * n * v + 4 * total_rows
                               + cores * 8 * 128 * 4)),
    )(x, tgt2d)

    # Sum per-core partials; 'batchmean' divides by the original batch size N.
    return jnp.sum(out[:, 0, 0]) / jnp.float32(n)


def _reference_loss(x, target, *, size, padding_idx, smoothing):
    n, v = x.shape
    confidence = 1.0 - smoothing
    smooth_val = smoothing / (size - 2)
    cols = jnp.arange(v)[None, :]
    tgt = target[:, None]
    td = jnp.where(cols == tgt, confidence, smooth_val)
    td = jnp.where(cols == padding_idx, 0.0, td)
    td = jnp.where(tgt == padding_idx, 0.0, td)
    elem = jnp.where(td > 0.0, td * (jnp.log(jnp.maximum(td, 1e-30)) - x), 0.0)
    return jnp.sum(elem) / n


if __name__ == "__main__":
    N, SIZE = 16, 32
    PADDING_IDX = 0
    SMOOTHING = 0.1

    key = jax.random.PRNGKey(0)
    kx, kt = jax.random.split(key)

    logits = jax.random.normal(kx, (N, SIZE), dtype=jnp.float32)
    x = jax.nn.log_softmax(logits, axis=-1)          # KLDivLoss input = log-probs
    target = jax.random.randint(kt, (N,), 0, SIZE, dtype=jnp.int32)
    target = target.at[3].set(PADDING_IDX)           # include a padding row

    loss = label_smoothing_loss(x, target, size=SIZE,
                                padding_idx=PADDING_IDX, smoothing=SMOOTHING)
    loss = jax.block_until_ready(loss)

    ref = _reference_loss(x, target, size=SIZE,
                          padding_idx=PADDING_IDX, smoothing=SMOOTHING)
    assert jnp.allclose(loss, ref, rtol=1e-5, atol=1e-5), (loss, ref)

    print("KERNEL_OK")
</pallas_src>

<mosaic_0001>
module attributes {stable_mosaic.version = 11 : i64} {
  func.func @_label_smoothing_kernel(%arg0: i32, %arg1: memref<16x32xf32, #tpu.memory_space<vmem>>, %arg2: memref<16x1xi32, #tpu.memory_space<vmem>>, %arg3: memref<1x8x128xf32, #tpu.memory_space<vmem>>, %arg4: memref<16x1xf32, #tpu.memory_space<vmem>>) attributes {dimension_semantics = [#tpu.dimension_semantics<arbitrary>], iteration_bounds = array<i64: 1>, scalar_prefetch = 0 : i64, scratch_operands = 1 : i64, tpu.core_type = #tpu.core_type<tc>, window_params = [{transform_indices = @transform_0, window_bounds = array<i64: 16, 32>}, {pipeline_mode = #tpu.pipeline_mode<synchronous>, transform_indices = @transform_1, window_bounds = array<i64: 16, 1>}, {pipeline_mode = #tpu.pipeline_mode<synchronous>, transform_indices = @transform_2, window_bounds = array<i64: 1, 8, 128>}]} {
    %c0_i32 = arith.constant 0 : i32
    %0 = arith.cmpi eq, %arg0, %c0_i32 : i32
    %1 = arith.extui %0 : i1 to i32
    %c0_i32_0 = arith.constant 0 : i32
    %2 = arith.cmpi ne, %1, %c0_i32_0 : i32
    scf.if %2 {
      %cst_18 = arith.constant 0.000000e+00 : f32
      %38 = vector.broadcast %cst_18 : f32 to vector<16x1xf32>
      %c0_19 = arith.constant 0 : index
      %c0_20 = arith.constant 0 : index
      %39 = vector.load %arg4[%c0_19, %c0_20] : memref<16x1xf32, #tpu.memory_space<vmem>>, vector<16x1xf32>
      tpu.vector_store %arg4[%c0_19, %c0_20], %38 {strides = array<i32>} : memref<16x1xf32, #tpu.memory_space<vmem>>, vector<16x1xf32>,
    } else {
    }
    %c0 = arith.constant 0 : index
    %c0_1 = arith.constant 0 : index
    %3 = vector.load %arg1[%c0, %c0_1] : memref<16x32xf32, #tpu.memory_space<vmem>>, vector<16x32xf32>
    %c16_i32 = arith.constant 16 : i32
    %4 = arith.muli %arg0, %c16_i32 : i32
    %5 = tpu.assume_multiple %4, 8 : i32
    %6 = arith.index_cast %5 : i32 to index
    %c0_2 = arith.constant 0 : index
    %7 = vector.load %arg2[%6, %c0_2] : memref<16x1xi32, #tpu.memory_space<vmem>>, vector<16x1xi32>
    %cst = arith.constant 1.000000e+00 : f32
    %8 = vector.broadcast %cst : f32 to vector<32x1xf32>
    %cst_3 = arith.constant dense<0.000000e+00> : vector<16x1xf32>
    %9 = tpu.matmul %3, %8, %cst_3 {dimension_numbers = #tpu.dot_dimension_numbers<[1], [0], [0], [1], [0, 0, 1, 1], [], []>} : vector<16x32xf32>, vector<32x1xf32>, vector<16x1xf32> -> vector<16x1xf32>
    %10 = vector.extract_strided_slice %3 {offsets = [0, 0], sizes = [16, 1], strides = [1, 1]} : vector<16x32xf32> to vector<16x1xf32>
    %11 = tpu.iota {dimensions = array<i32: 1>} : vector<1x32xi32>
    %12 = vector.broadcast %11 : vector<1x32xi32> to vector<16x32xi32>
    %13 = vector.broadcast %7 : vector<16x1xi32> to vector<16x32xi32>
    %14 = arith.cmpi eq, %12, %13 : vector<16x32xi32>
    %cst_4 = arith.constant 0.000000e+00 : f32
    %15 = vector.broadcast %cst_4 : f32 to vector<16x32xf32>
    %16 = arith.select %14, %3, %15 : vector<16x32xi1>, vector<16x32xf32>
    %cst_5 = arith.constant dense<0.000000e+00> : vector<16xf32>
    %17 = vector.multi_reduction <add>, %16, %cst_5 [1] : vector<16x32xf32> to vector<16xf32>
    %18 = vector.shape_cast %17 : vector<16xf32> to vector<16x1xf32>
    %19 = arith.subf %9, %10 : vector<16x1xf32>
    %cst_6 = arith.constant 0.00333333341 : f32
    %20 = vector.broadcast %cst_6 : f32 to vector<16x1xf32>
    %21 = arith.mulf %20, %19 : vector<16x1xf32>
    %cst_7 = arith.constant 0.899999976 : f32
    %cst_8 = arith.constant 0.00333333341 : f32
    %22 = arith.subf %cst_7, %cst_8 : f32
    %23 = vector.broadcast %22 : f32 to vector<16x1xf32>
    %24 = arith.mulf %23, %18 : vector<16x1xf32>
    %25 = arith.addf %21, %24 : vector<16x1xf32>
    %c0_i32_9 = arith.constant 0 : i32
    %26 = vector.broadcast %c0_i32_9 : i32 to vector<16x1xi32>
    %27 = arith.cmpi ne, %7, %26 : vector<16x1xi32>
    %cst_10 = arith.constant -0.665202737 : f32
    %28 = vector.broadcast %cst_10 : f32 to vector<16x1xf32>
    %29 = arith.subf %28, %25 : vector<16x1xf32>
    %cst_11 = arith.constant 0.000000e+00 : f32
    %30 = vector.broadcast %cst_11 : f32 to vector<16x1xf32>
    %31 = arith.select %27, %29, %30 : vector<16x1xi1>, vector<16x1xf32>
    %c0_12 = arith.constant 0 : index
    %c0_13 = arith.constant 0 : index
    %32 = vector.load %arg4[%c0_12, %c0_13] : memref<16x1xf32, #tpu.memory_space<vmem>>, vector<16x1xf32>
    %33 = arith.addf %32, %31 : vector<16x1xf32>
    %c0_14 = arith.constant 0 : index
    %c0_15 = arith.constant 0 : index
    %34 = vector.load %arg4[%c0_14, %c0_15] : memref<16x1xf32, #tpu.memory_space<vmem>>, vector<16x1xf32>
    tpu.vector_store %arg4[%c0_14, %c0_15], %33 {strides = array<i32>} : memref<16x1xf32, #tpu.memory_space<vmem>>, vector<16x1xf32>,
    %c0_i32_16 = arith.constant 0 : i32
    %35 = arith.cmpi eq, %arg0, %c0_i32_16 : i32
    %36 = arith.extui %35 : i1 to i32
    %c0_i32_17 = arith.constant 0 : i32
    %37 = arith.cmpi ne, %36, %c0_i32_17 : i32
    scf.if %37 {
      %c0_18 = arith.constant 0 : index
      %c0_19 = arith.constant 0 : index
      %38 = vector.load %arg4[%c0_18, %c0_19] : memref<16x1xf32, #tpu.memory_space<vmem>>, vector<16x1xf32>
      %39 = vector.shape_cast %38 : vector<16x1xf32> to vector<1x16x1xf32>
      %cst_20 = arith.constant dense<0.000000e+00> : vector<1xf32>
      %40 = vector.multi_reduction <add>, %39, %cst_20 [1, 2] : vector<1x16x1xf32> to vector<1xf32>
      %41 = vector.shape_cast %40 : vector<1xf32> to vector<1x1x1xf32>
      %42 = vector.extract %41[0, 0, 0] : f32 from vector<1x1x1xf32>
      %43 = vector.broadcast %42 : f32 to vector<1x8x128xf32>
      %c0_21 = arith.constant 0 : index
      %c0_22 = arith.constant 0 : index
      %c0_23 = arith.constant 0 : index
      %44 = vector.load %arg3[%c0_21, %c0_22, %c0_23] : memref<1x8x128xf32, #tpu.memory_space<vmem>>, vector<1x8x128xf32>
      tpu.vector_store %arg3[%c0_21, %c0_22, %c0_23], %43 {strides = array<i32>} : memref<1x8x128xf32, #tpu.memory_space<vmem>>, vector<1x8x128xf32>,
    } else {
    }
    return
  }
  func.func @transform_0(%arg0: i32) -> (i32, i32) {
    %c0_i32 = arith.constant 0 : i32
    %c0_i32_0 = arith.constant 0 : i32
    return %arg0, %c0_i32 : i32, i32
  }
  func.func @transform_1(%arg0: i32) -> (i32, i32) {
    %c0_i32 = arith.constant 0 : i32
    %c0_i32_0 = arith.constant 0 : i32
    %c0_i32_1 = arith.constant 0 : i32
    return %c0_i32, %c0_i32_0 : i32, i32
  }
  func.func @transform_2(%arg0: i32) -> (i32, i32, i32) {
    %c0_i32 = arith.constant 0 : i32
    %c0_i32_0 = arith.constant 0 : i32
    %c0_i32_1 = arith.constant 0 : i32
    %c0_i32_2 = arith.constant 0 : i32
    return %c0_i32, %c0_i32_0, %c0_i32_1 : i32, i32, i32
  }
}

</mosaic_0001>

<llo_original>
// kernel: tpu_custom_call.1
$region0: #{tpu_custom_call.1}
  #allocation0 [shape = 'u32[]', space=smem, size = 0x4, offset = 0x4, fixed_abs, tag = 'smem constant byte address 0x4 - core index']
  #allocation1 [shape = 'u32[144,128]{1,0:T(1,128)}', space=vmem, size = 0x12000, scoped, tag = 'internal scratch']
  #allocation2 [shape = 'f32[16,1]{1,0:T(8,128)}', space=vmem, size = 0x2000, scoped, tag = 'scratch operand']
  %s0 = inlined_call_operand.vmem [shape: f32[16,32], index: 0, kind: input, shape index: {}]
  %s1 = inlined_call_operand.vmem [shape: s32[16,1], index: 1, kind: input, shape index: {}]
  %s2 = inlined_call_operand.hbm [shape: f32[1,8,128], index: 2, kind: output, shape index: {}]
  %s3 = sld [smem:[#allocation0]]
  $region26: #{tpu_custom_call.1} parent=0
    _
  %s5 = ssub.s32 1, %s3
  %s6 = scalar_select 0, %s5, %s3
  $region1: #{tpu_custom_call.1} parent=0
    #allocation3 [shape = 'u8[4096]{0}', space=vmem, size = 0x1000, scoped, tag = 'output window, operand 0, single buffered']
    #allocation4 [shape = 's32[1]{0}', space=sflag, size = 0x4, scoped, tag = 'scoped memory for tpu_custom_call.1']
    %7 = vsyncpa [#allocation4], 0
    // Predicated region
    $region2: #{tpu_custom_call.1} parent=1 // pred_check
      _
    $region3: #{tpu_custom_call.1} parent=1 // pred_check_branch
      %9 = sbr.rel (0) target = $region5
    $region4: #{tpu_custom_call.1} parent=1 // pred_region
      _
    $region5: #{tpu_custom_call.1} parent=1 // pred_fallthru
      _
    // Predicated region
    $region6: #{tpu_custom_call.1} parent=1 // pred_check
      _
    $region7: #{tpu_custom_call.1} parent=1 // pred_check_branch
      %11 = sbr.rel (0) target = $region9
    $region8: #{tpu_custom_call.1} parent=1 // pred_region
      _
    $region9: #{tpu_custom_call.1} parent=1 // pred_fallthru
      _
    %p12 = scmp.eq.s32.totalorder 0, 0
    // Predicated region
    $region10: #{tpu_custom_call.1} parent=1 // pred_check
      %p13 = pneg %p12
    $region11: #{tpu_custom_call.1} parent=1 // pred_check_branch
      %15 = sbr.rel (%p13) target = $region13
    $region12: #{tpu_custom_call.1} parent=1 // pred_region
      %vm16 = vcmask 7168
      %17 = vst.msk [vmem:[#allocation2] sm:$0xff] %vm16, 0.0
      %18 = vst.msk [vmem:[#allocation2 + $0x8] sm:$0xff] %vm16, 0.0
    $region13: #{tpu_custom_call.1} parent=1 // pred_fallthru
      _
    %v19 = vld [vmem:[%s0] sm:$0xff]
    %v20 = vld [vmem:[%s0 + $0x8] sm:$0xff]
    %s21 = smul.u32 0, 16
    %s22 = scalar_lea.vmem %s1, %s21
    %v23 = vld [vmem:[%s22] sm:$0xff]
    %v24 = vld [vmem:[%s22 + $0x8] sm:$0xff]
    %vm25 = vcmask 261120
    %v27 = vsel %vm25, %v19, 0
    %v30 = vsel %vm25, %v20, 0
    %32 = vmatprep.subr.mxu0 0.0
    %33 = vmatpush1.msra.mxu0 0.0
    %34 = vmatprep.subr.mxu0 0.0
    %35 = vmatpush1.msra.mxu0 0.0
    %36 = vmatprep.subr.mxu0 0.0
    %37 = vmatpush1.msra.mxu0 0.0
    %38 = vmatprep.subr.mxu0 0.0
    %39 = vmatpush1.msra.mxu0 0.0
    %40 = vmatprep.subr.mxu0 0.0
    %41 = vmatpush1.msra.mxu0 0.0
    %42 = vmatprep.subr.mxu0 0.0
    %43 = vmatpush1.msra.mxu0 0.0
    %44 = vmatprep.subr.mxu0 0.0
    %45 = vmatpush1.msra.mxu0 0.0
    %46 = vmatprep.subr.mxu0 0.0
    %47 = vmatpush1.msra.mxu0 0.0
    %48 = vmatprep.subr.mxu0 0.0
    %49 = vmatpush1.msra.mxu0 0.0
    %50 = vmatprep.subr.mxu0 0.0
    %51 = vmatpush1.msra.mxu0 0.0
    %52 = vmatprep.subr.mxu0 0.0
    %53 = vmatpush1.msra.mxu0 0.0
    %54 = vmatprep.subr.mxu0 0.0
    %55 = vmatpush1.msra.mxu0 0.0
    %56 = vmatprep.subr.mxu0 0.0
    %57 = vmatpush1.msra.mxu0 1.0
    %58 = vmatprep.subr.mxu0 0.0
    %59 = vmatpush1.msra.mxu0 1.0
    %60 = vmatprep.subr.mxu0 0.0
    %61 = vmatpush1.msra.mxu0 1.0
    %62 = vmatprep.subr.mxu0 0.0
    %63 = vmatpush1.msra.mxu0 1.0
    %64 = vmatprep.subr.mxu0 0.0
    %65 = vmatpush2.msra.mxu0 0.0
    %66 = vmatprep.subr.mxu0 0.0
    %67 = vmatpush2.msra.mxu0 0.0
    %68 = vmatprep.subr.mxu0 0.0
    %69 = vmatpush2.msra.mxu0 0.0
    %70 = vmatprep.subr.mxu0 0.0
    %71 = vmatpush2.msra.mxu0 0.0
    %72 = vmatprep.subr.mxu0 0.0
    %73 = vmatpush2.msra.mxu0 0.0
    %74 = vmatprep.subr.mxu0 0.0
    %75 = vmatpush2.msra.mxu0 0.0
    %76 = vmatprep.subr.mxu0 0.0
    %77 = vmatpush2.msra.mxu0 0.0
    %78 = vmatprep.subr.mxu0 0.0
    %79 = vmatpush2.msra.mxu0 0.0
    %80 = vmatprep.subr.mxu0 0.0
    %81 = vmatpush2.msra.mxu0 0.0
    %82 = vmatprep.subr.mxu0 0.0
    %83 = vmatpush2.msra.mxu0 0.0
    %84 = vmatprep.subr.mxu0 0.0
    %85 = vmatpush2.msra.mxu0 0.0
    %86 = vmatprep.subr.mxu0 0.0
    %87 = vmatpush2.msra.mxu0 0.0
    %88 = vmatprep.subr.mxu0 0.0
    %89 = vmatpush2.msra.mxu0 0.0
    %90 = vmatprep.subr.mxu0 0.0
    %91 = vmatpush2.msra.mxu0 0.0
    %92 = vmatprep.subr.mxu0 0.0
    %93 = vmatpush2.msra.mxu0 0.0
    %94 = vmatprep.subr.mxu0 0.0
    %95 = vmatpush2.msra.mxu0 0.0
    %96 = vmatprep.mubr.f32.mxu0 0.0
    %97 = vmatmul.mubr.f32.gmra.mxu0 %v27
    %v98 = vpop.f32.mrf.mxu0
    %v99 = vadd.f32 0.0, %v98
    %v100 = vpop.f32.mrf.mxu0
    %101 = vmatprep.mubr.f32.mxu0 0.0
    %102 = vmatmul.mubr.f32.gmra.mxu0 %v30
    %v103 = vpop.f32.mrf.mxu0
    %v104 = vadd.f32 0.0, %v103
    %v105 = vpop.f32.mrf.mxu0
    %106 = vdwg.mxu0
    %v107 = vlaneseq
    %v108 = vand.u32 %v107, 127
    %109 = vset.pattern.permute.xlu0 0
    %110 = vperm.xlu0 %109, %v23
    %v111 = vpop.permute.xlu0 %110
    %112 = vset.pattern.permute.xlu0 0
    %113 = vperm.xlu0 %112, %v24
    %v114 = vpop.permute.xlu0 %113
    %vm115 = vcmp.eq.s32.totalorder %v108, %v111
    %vm116 = vcmp.eq.s32.totalorder %v108, %v114
    %v117 = vsel %vm115, %v19, 0.0
    %v118 = vsel %vm116, %v20, 0.0
    %v119 = vsel %vm25, %v117, 0.0
    %120 = vadd.xlane.f32.xlu0 %v119
    %v121 = vpop.xlane.xlu0 %120
    %v122 = vsel %vm25, %v118, 0.0
    %123 = vadd.xlane.f32.xlu0 %v122
    %v124 = vpop.xlane.xlu0 %123
    %v125 = vsub.f32 %v99, %v19
    %v126 = vsub.f32 %v104, %v20
    %v127 = vmul.f32 %v125, 0.0033333334
    %v128 = vmul.f32 %v126, 0.0033333334
    %v129 = vmul.f32 %v121, 0.89666665
    %v130 = vmul.f32 %v124, 0.89666665
    %v131 = vadd.f32 %v127, %v129
    %v132 = vadd.f32 %v128, %v130
    %vm133 = vcmp.ne.s32.totalorder %v23, 0
    %vm134 = vcmp.ne.s32.totalorder %v24, 0
    %v135 = vsub.f32 -0.66520274, %v131
    %v136 = vsub.f32 -0.66520274, %v132
    %v137 = vsel %vm133, %v135, 0.0
    %v138 = vsel %vm134, %v136, 0.0
    %v139 = vld [vmem:[#allocation2] sm:$0xff]
    %v140 = vld [vmem:[#allocation2 + $0x8] sm:$0xff]
    %v141 = vadd.f32 %v139, %v137
    %v142 = vadd.f32 %v140, %v138
    %vm143 = vcmask 7168
    %144 = vst.msk [vmem:[#allocation2] sm:$0xff] %vm143, %v141
    %145 = vst.msk [vmem:[#allocation2 + $0x8] sm:$0xff] %vm143, %v142
    // Predicated region
    $region14: #{tpu_custom_call.1} parent=1 // pred_check
      %p146 = pneg %p12
    $region15: #{tpu_custom_call.1} parent=1 // pred_check_branch
      %148 = sbr.rel (%p146) target = $region17
    $region16: #{tpu_custom_call.1} parent=1 // pred_region
      %v149 = vld [vmem:[#allocation2] sm:$0xff]
      %v150 = vld [vmem:[#allocation2 + $0x8] sm:$0xff]
      %v151 = vsel %vm143, %v149, 0.0
      %v152 = vsel %vm143, %v150, 0.0
      %v153 = vadd.f32 %v151, %v152
      %154 = vadd.xlane.f32.xlu0 %v153
      %v155 = vpop.xlane.xlu0 %154
      %v156 = vrot.slane %v155, 4
      %v157 = vadd.f32 %v155, %v156
      %v158 = vrot.slane %v157, 2
      %v159 = vadd.f32 %v157, %v158
      %v160 = vrot.slane %v159, 1
      %v161 = vadd.f32 %v159, %v160
      %s162 = vtos %v161
      %v163 = vstv %s162
      %164 = vst [vmem:[#allocation3] sm:$0xff] %v163
    $region17: #{tpu_custom_call.1} parent=1 // pred_fallthru
      _
    // Predicated region
    $region18: #{tpu_custom_call.1} parent=1 // pred_check
      _
    $region19: #{tpu_custom_call.1} parent=1 // pred_check_branch
      %166 = sbr.rel (0) target = $region21
    $region20: #{tpu_custom_call.1} parent=1 // pred_region
      %s168 = ssub.s32 128, 128
      %169 = vsyncadd [#allocation4], %s168
      %s171 = sshll.u32 [#allocation3], 4
      %s172 = int_to_ptr.vmem [resolvable:$true] %s171
      %174 = dma.vmem_to_hbm [thread:$0]  %s172, 128, %s2, [#allocation4]
    $region21: #{tpu_custom_call.1} parent=1 // pred_fallthru
      _
    // Predicated region
    $region22: #{tpu_custom_call.1} parent=1 // pred_check
      _
    $region23: #{tpu_custom_call.1} parent=1 // pred_check_branch
      %176 = sbr.rel (0) target = $region25
    $region24: #{tpu_custom_call.1} parent=1 // pred_region
      %177 = dma.done [#allocation4], 128
    $region25: #{tpu_custom_call.1} parent=1 // pred_fallthru
      _
    %178 = vsyncpa [#allocation4], 1

</llo_original>
